<compile_context>
chip_gen: v6e
topology: v6e:2x2x1
jax: 0.10.0
libtpu: 0.0.40
codegen_flags: <defaults>
</compile_context>

<pallas_src>
import functools

import jax
import jax.numpy as jnp
from jax.experimental import pallas as pl
from jax.experimental.pallas import tpu as pltpu


PATCH = 32      # ResNet-152 total stride before the avg pool
FEAT_C = 256    # stand-in for resnet.fc.in_features (= 2048 in the real model)

# Tile sizes sized for the 256-wide MXU on v6e/v7x; they clamp to the array dims at
# small shapes.  (On v5e, 128-granular TN/TK are marginally better; these still fit.)
TM_MAX = 256
TN_MAX = 256
TK_MAX = 512


def _round_up(x, m):
    return ((x + m - 1) // m) * m


def _pad2d(a, rows, cols):
    pr, pc = rows - a.shape[0], cols - a.shape[1]
    if pr or pc:
        a = jnp.pad(a, ((0, pr), (0, pc)))
    return a


# ----------------------------------------------------------------------------
# Kernel 1: backbone stand-in (conv-as-GEMM) + ReLU + fused global avg-pool.
#   x        : (M_pad, K_pad) bf16   im2col patch rows (M = B*h*w, K = 3*P*P)
#   w        : (K_pad, C_pad) bf16   conv weight, flattened
#   pooled   : (B_pad, C_pad) f32    per-image mean of ReLU'd features
# Grid = (C/tn, M/tm, K/tk); the pooled output block index depends only on the
# outermost (N) axis, so it stays resident in VMEM while M and K are reduced.
# ----------------------------------------------------------------------------
def _backbone_pool_kernel(x_ref, w_ref, pooled_ref, acc_ref, *, tm, hw, b_pad):
    i = pl.program_id(1)          # M (row) tile
    k = pl.program_id(2)          # K (reduction) tile
    nk = pl.num_programs(2)

    @pl.when((i == 0) & (k == 0))
    def _():
        pooled_ref[...] = jnp.zeros_like(pooled_ref)

    @pl.when(k == 0)
    def _():
        acc_ref[...] = jnp.zeros_like(acc_ref)

    acc_ref[...] += jnp.dot(x_ref[...], w_ref[...],
                            preferred_element_type=jnp.float32)

    @pl.when(k == nk - 1)
    def _():
        feat = jnp.maximum(acc_ref[...], 0.0)            # (tm, tn) ReLU'd features, f32
        # Segment-mean over rows by image: seg[b, r] = 1/hw iff global row i*tm + r
        # belongs to image b.  Folding 1/hw here removes a separate divide; padded
        # rows are all-zero so they contribute nothing regardless of assignment.
        gr = i * tm + jax.lax.broadcasted_iota(jnp.int32, (b_pad, tm), 1)
        bid = jax.lax.broadcasted_iota(jnp.int32, (b_pad, tm), 0)
        lo = bid * hw
        sel = (gr >= lo) & (gr < lo + hw)
        seg = jnp.where(sel, jnp.float32(1.0 / hw), jnp.float32(0.0))
        pooled_ref[...] += jnp.dot(seg, feat, preferred_element_type=jnp.float32)


def backbone_conv_relu_pool(x_patches, conv_w, *, batch, hw):
    m_pad, k_pad = x_patches.shape
    _, c_pad = conv_w.shape
    b_pad = _round_up(batch, 8)

    tm = min(TM_MAX, m_pad)
    tn = min(TN_MAX, c_pad)
    tk = min(TK_MAX, k_pad)
    grid = (c_pad // tn, m_pad // tm, k_pad // tk)

    kernel = functools.partial(_backbone_pool_kernel, tm=tm, hw=hw, b_pad=b_pad)
    flops = 2 * m_pad * k_pad * c_pad
    bytes_accessed = (m_pad * k_pad * 2 * grid[0]      # x re-read per N tile
                      + k_pad * c_pad * 2 * grid[1]    # w re-read per M tile
                      + b_pad * c_pad * 4)             # pooled output

    return pl.pallas_call(
        kernel,
        out_shape=jax.ShapeDtypeStruct((b_pad, c_pad), jnp.float32),
        grid_spec=pltpu.PrefetchScalarGridSpec(
            num_scalar_prefetch=0,
            grid=grid,
            in_specs=[
                pl.BlockSpec((tm, tk), lambda j, i, k: (i, k)),
                pl.BlockSpec((tk, tn), lambda j, i, k: (k, j)),
            ],
            out_specs=pl.BlockSpec((b_pad, tn), lambda j, i, k: (0, j)),
            scratch_shapes=[pltpu.VMEM((tm, tn), jnp.float32)],
        ),
        compiler_params=pltpu.CompilerParams(
            dimension_semantics=("parallel", "arbitrary", "arbitrary"),
            vmem_limit_bytes=32 * 1024 * 1024,
        ),
        cost_estimate=pl.CostEstimate(flops=flops, transcendentals=0,
                                      bytes_accessed=bytes_accessed),
    )(x_patches, conv_w)


# ----------------------------------------------------------------------------
# Kernel 2: head Linear on the pooled features (tiny: B_pad x C_pad @ C_pad x E_pad).
# E is padded to a multiple of 128 so the output stores are lane-dense.
# ----------------------------------------------------------------------------
def _head_kernel(p_ref, w_ref, b_ref, o_ref):
    o_ref[...] = (jnp.dot(p_ref[...], w_ref[...],
                          preferred_element_type=jnp.float32) + b_ref[...])


def pooled_linear(pooled, w_t, bias):
    b_pad, c_pad = pooled.shape
    _, e_pad = w_t.shape
    return pl.pallas_call(
        _head_kernel,
        out_shape=jax.ShapeDtypeStruct((b_pad, e_pad), jnp.float32),
        grid=(1,),
        in_specs=[
            pl.BlockSpec((b_pad, c_pad), lambda i: (0, 0)),
            pl.BlockSpec((c_pad, e_pad), lambda i: (0, 0)),
            pl.BlockSpec((1, e_pad), lambda i: (0, 0)),
        ],
        out_specs=pl.BlockSpec((b_pad, e_pad), lambda i: (0, 0)),
        compiler_params=pltpu.CompilerParams(dimension_semantics=("arbitrary",)),
    )(pooled, w_t, bias)


# ----------------------------------------------------------------------------
# Parameters
# ----------------------------------------------------------------------------
def init_params(key, embed_size):
    k1, k2, k3 = jax.random.split(key, 3)
    conv_w = 0.02 * jax.random.normal(k1, (3 * PATCH * PATCH, FEAT_C), jnp.float32)
    lin_w = 0.02 * jax.random.normal(k2, (embed_size, FEAT_C), jnp.float32)  # PyTorch (E, C)
    lin_b = 0.02 * jax.random.normal(k3, (embed_size,), jnp.float32)
    return conv_w, lin_w, lin_b


def prepare_params(conv_w, lin_w, lin_b):
    """One-time layout/dtype prep: pad, transpose the Linear weight, cast conv to bf16."""
    k, c = conv_w.shape
    e = lin_w.shape[0]
    tn = min(TN_MAX, _round_up(c, 128))
    tk = min(TK_MAX, _round_up(k, 128))
    c_pad = _round_up(c, tn)
    k_pad = _round_up(k, tk)
    e_pad = _round_up(e, 128)
    return dict(
        conv_w=_pad2d(conv_w, k_pad, c_pad).astype(jnp.bfloat16),   # (K_pad, C_pad) bf16
        lin_w_t=_pad2d(lin_w.T, c_pad, e_pad),                      # (C_pad, E_pad) f32
        lin_b=_pad2d(lin_b.reshape(1, -1), 1, e_pad),               # (1, E_pad) f32
        embed=e,
    )


# ----------------------------------------------------------------------------
# EncoderCNN forward
# ----------------------------------------------------------------------------
def encoder_cnn_forward(image, params):
    """image: (B, 3, H, W) NCHW f32  ->  features: (B, embed_size) f32."""
    b, cin, h_px, w_px = image.shape
    h, w = h_px // PATCH, w_px // PATCH
    hw = h * w
    m = b * hw

    # glue: im2col to (M, K) patch rows (K on the 128-wide lanes).
    # TODO(synk): this one-time reshape/transpose could be replaced by a patch-gathering
    #             BlockSpec index_map to avoid the extra HBM pass over the input.
    x = image.reshape(b, cin, h, PATCH, w, PATCH)
    x = jnp.transpose(x, (0, 2, 4, 1, 3, 5))
    x_patches = x.reshape(m, cin * PATCH * PATCH)

    k_pad, _ = params["conv_w"].shape
    tm = min(TM_MAX, _round_up(m, 8))
    m_pad = _round_up(m, tm)
    x_patches = _pad2d(x_patches, m_pad, k_pad).astype(jnp.bfloat16)

    # Pallas: tiled GEMM + ReLU + fused global avg-pool  ->  (B_pad, C_pad) pooled means
    pooled = backbone_conv_relu_pool(x_patches, params["conv_w"], batch=b, hw=hw)

    # Pallas: Linear head on pooled features (exact EncoderCNN head)
    out = pooled_linear(pooled, params["lin_w_t"], params["lin_b"])
    return out[:b, :params["embed"]]


if __name__ == "__main__":
    embed_size = 32
    B, H, W = 2, 64, 64

    key = jax.random.PRNGKey(0)
    k_img, k_par = jax.random.split(key)
    image = jax.random.normal(k_img, (B, 3, H, W), jnp.float32)
    conv_w, lin_w, lin_b = init_params(k_par, embed_size)
    params = prepare_params(conv_w, lin_w, lin_b)

    features = encoder_cnn_forward(image, params)
    features = jax.block_until_ready(features)

    assert features.shape == (B, embed_size), features.shape
    assert features.dtype == jnp.float32

    # pure-JAX reference of the same computation (bf16 conv operands, f32 math)
    hp, wp = H // PATCH, W // PATCH
    x = image.reshape(B, 3, hp, PATCH, wp, PATCH)
    x = jnp.transpose(x, (0, 2, 4, 1, 3, 5)).reshape(B * hp * wp, -1)
    xb = x.astype(jnp.bfloat16).astype(jnp.float32)
    wb = conv_w.astype(jnp.bfloat16).astype(jnp.float32)
    ref_feat = jnp.maximum(
        jnp.dot(xb, wb, precision=jax.lax.Precision.HIGHEST), 0.0
    ).reshape(B, hp * wp, FEAT_C)
    ref_out = jnp.dot(ref_feat.mean(axis=1), lin_w.T,
                      precision=jax.lax.Precision.HIGHEST) + lin_b
    assert jnp.allclose(features, ref_out, atol=5e-3, rtol=5e-3), (
        float(jnp.max(jnp.abs(features - ref_out))))

    print("KERNEL_OK")
</pallas_src>

<mosaic_0001>
module attributes {stable_mosaic.version = 11 : i64} {
  func.func @_backbone_pool_kernel(%arg0: i32, %arg1: i32, %arg2: i32, %arg3: memref<8x512xbf16, #tpu.memory_space<vmem>>, %arg4: memref<512x256xbf16, #tpu.memory_space<vmem>>, %arg5: memref<8x256xf32, #tpu.memory_space<vmem>>, %arg6: memref<8x256xf32, #tpu.memory_space<vmem>>) attributes {dimension_semantics = [#tpu.dimension_semantics<parallel>, #tpu.dimension_semantics<arbitrary>, #tpu.dimension_semantics<arbitrary>], iteration_bounds = array<i64: 1, 1, 6>, scalar_prefetch = 0 : i64, scratch_operands = 1 : i64, tpu.core_type = #tpu.core_type<tc>, window_params = [{transform_indices = @transform_0, window_bounds = array<i64: 8, 512>}, {transform_indices = @transform_1, window_bounds = array<i64: 512, 256>}, {transform_indices = @transform_2, window_bounds = array<i64: 8, 256>}]} {
    %c0_i32 = arith.constant 0 : i32
    %0 = arith.cmpi eq, %arg1, %c0_i32 : i32
    %c0_i32_0 = arith.constant 0 : i32
    %1 = arith.cmpi eq, %arg2, %c0_i32_0 : i32
    %2 = arith.andi %0, %1 : i1
    %3 = arith.extui %2 : i1 to i32
    %c0_i32_1 = arith.constant 0 : i32
    %4 = arith.cmpi ne, %3, %c0_i32_1 : i32
    scf.if %4 {
      %cst_12 = arith.constant 0.000000e+00 : f32
      %17 = vector.broadcast %cst_12 : f32 to vector<8x256xf32>
      %c0_13 = arith.constant 0 : index
      %c0_14 = arith.constant 0 : index
      %18 = vector.load %arg5[%c0_13, %c0_14] : memref<8x256xf32, #tpu.memory_space<vmem>>, vector<8x256xf32>
      tpu.vector_store %arg5[%c0_13, %c0_14], %17 {strides = array<i32>} : memref<8x256xf32, #tpu.memory_space<vmem>>, vector<8x256xf32>,
    } else {
    }
    %c0_i32_2 = arith.constant 0 : i32
    %5 = arith.cmpi eq, %arg2, %c0_i32_2 : i32
    %6 = arith.extui %5 : i1 to i32
    %c0_i32_3 = arith.constant 0 : i32
    %7 = arith.cmpi ne, %6, %c0_i32_3 : i32
    scf.if %7 {
      %cst_12 = arith.constant 0.000000e+00 : f32
      %17 = vector.broadcast %cst_12 : f32 to vector<8x256xf32>
      %c0_13 = arith.constant 0 : index
      %c0_14 = arith.constant 0 : index
      %18 = vector.load %arg6[%c0_13, %c0_14] : memref<8x256xf32, #tpu.memory_space<vmem>>, vector<8x256xf32>
      tpu.vector_store %arg6[%c0_13, %c0_14], %17 {strides = array<i32>} : memref<8x256xf32, #tpu.memory_space<vmem>>, vector<8x256xf32>,
    } else {
    }
    %c0 = arith.constant 0 : index
    %c0_4 = arith.constant 0 : index
    %8 = vector.load %arg6[%c0, %c0_4] : memref<8x256xf32, #tpu.memory_space<vmem>>, vector<8x256xf32>
    %c0_5 = arith.constant 0 : index
    %c0_6 = arith.constant 0 : index
    %9 = vector.load %arg3[%c0_5, %c0_6] : memref<8x512xbf16, #tpu.memory_space<vmem>>, vector<8x512xbf16>
    %c0_7 = arith.constant 0 : index
    %c0_8 = arith.constant 0 : index
    %10 = vector.load %arg4[%c0_7, %c0_8] : memref<512x256xbf16, #tpu.memory_space<vmem>>, vector<512x256xbf16>
    %cst = arith.constant dense<0.000000e+00> : vector<8x256xf32>
    %11 = tpu.matmul %9, %10, %cst {dimension_numbers = #tpu.dot_dimension_numbers<[1], [0], [0], [1], [0, 0, 1, 1], [], []>} : vector<8x512xbf16>, vector<512x256xbf16>, vector<8x256xf32> -> vector<8x256xf32>
    %12 = arith.addf %8, %11 : vector<8x256xf32>
    %c0_9 = arith.constant 0 : index
    %c0_10 = arith.constant 0 : index
    %13 = vector.load %arg6[%c0_9, %c0_10] : memref<8x256xf32, #tpu.memory_space<vmem>>, vector<8x256xf32>
    tpu.vector_store %arg6[%c0_9, %c0_10], %12 {strides = array<i32>} : memref<8x256xf32, #tpu.memory_space<vmem>>, vector<8x256xf32>,
    %c5_i32 = arith.constant 5 : i32
    %14 = arith.cmpi eq, %arg2, %c5_i32 : i32
    %15 = arith.extui %14 : i1 to i32
    %c0_i32_11 = arith.constant 0 : i32
    %16 = arith.cmpi ne, %15, %c0_i32_11 : i32
    scf.if %16 {
      %c0_12 = arith.constant 0 : index
      %c0_13 = arith.constant 0 : index
      %17 = vector.load %arg6[%c0_12, %c0_13] : memref<8x256xf32, #tpu.memory_space<vmem>>, vector<8x256xf32>
      %cst_14 = arith.constant 0.000000e+00 : f32
      %18 = vector.broadcast %cst_14 : f32 to vector<8x256xf32>
      %19 = arith.maximumf %17, %18 : vector<8x256xf32>
      %c8_i32 = arith.constant 8 : i32
      %20 = arith.muli %arg1, %c8_i32 : i32
      %21 = tpu.iota {dimensions = array<i32: 1>} : vector<8x8xi32>
      %22 = vector.broadcast %20 : i32 to vector<8x8xi32>
      %23 = arith.addi %22, %21 : vector<8x8xi32>
      %24 = tpu.iota {dimensions = array<i32: 0>} : vector<8x8xi32>
      %c4_i32 = arith.constant 4 : i32
      %25 = vector.broadcast %c4_i32 : i32 to vector<8x8xi32>
      %26 = arith.muli %24, %25 : vector<8x8xi32>
      %27 = arith.cmpi sge, %23, %26 : vector<8x8xi32>
      %c4_i32_15 = arith.constant 4 : i32
      %28 = vector.broadcast %c4_i32_15 : i32 to vector<8x8xi32>
      %29 = arith.addi %26, %28 : vector<8x8xi32>
      %30 = arith.cmpi slt, %23, %29 : vector<8x8xi32>
      %31 = arith.andi %27, %30 : vector<8x8xi1>
      %cst_16 = arith.constant 2.500000e-01 : f32
      %cst_17 = arith.constant 0.000000e+00 : f32
      %32 = vector.broadcast %cst_16 : f32 to vector<8x8xf32>
      %33 = vector.broadcast %cst_17 : f32 to vector<8x8xf32>
      %34 = arith.select %31, %32, %33 : vector<8x8xi1>, vector<8x8xf32>
      %c0_18 = arith.constant 0 : index
      %c0_19 = arith.constant 0 : index
      %35 = vector.load %arg5[%c0_18, %c0_19] : memref<8x256xf32, #tpu.memory_space<vmem>>, vector<8x256xf32>
      %cst_20 = arith.constant dense<0.000000e+00> : vector<8x256xf32>
      %36 = tpu.matmul %34, %19, %cst_20 {dimension_numbers = #tpu.dot_dimension_numbers<[1], [0], [0], [1], [0, 0, 1, 1], [], []>} : vector<8x8xf32>, vector<8x256xf32>, vector<8x256xf32> -> vector<8x256xf32>
      %37 = arith.addf %35, %36 : vector<8x256xf32>
      %c0_21 = arith.constant 0 : index
      %c0_22 = arith.constant 0 : index
      %38 = vector.load %arg5[%c0_21, %c0_22] : memref<8x256xf32, #tpu.memory_space<vmem>>, vector<8x256xf32>
      tpu.vector_store %arg5[%c0_21, %c0_22], %37 {strides = array<i32>} : memref<8x256xf32, #tpu.memory_space<vmem>>, vector<8x256xf32>,
    } else {
    }
    return
  }
  func.func @transform_0(%arg0: i32, %arg1: i32, %arg2: i32) -> (i32, i32) {
    %c0_i32 = arith.constant 0 : i32
    return %arg1, %arg2 : i32, i32
  }
  func.func @transform_1(%arg0: i32, %arg1: i32, %arg2: i32) -> (i32, i32) {
    %c0_i32 = arith.constant 0 : i32
    return %arg2, %arg0 : i32, i32
  }
  func.func @transform_2(%arg0: i32, %arg1: i32, %arg2: i32) -> (i32, i32) {
    %c0_i32 = arith.constant 0 : i32
    %c0_i32_0 = arith.constant 0 : i32
    return %c0_i32, %arg0 : i32, i32
  }
}

</mosaic_0001>

<llo_original>
// kernel: tpu_custom_call.1
$region0: #{tpu_custom_call.1}
  #allocation0 [shape = 'u32[]', space=smem, size = 0x4, offset = 0x4, fixed_abs, tag = 'smem constant byte address 0x4 - core index']
  #allocation1 [shape = 'u32[144,128]{1,0:T(1,128)}', space=vmem, size = 0x12000, scoped, tag = 'internal scratch']
  #allocation2 [shape = 'f32[8,256]{1,0:T(8,128)}', space=vmem, size = 0x2000, scoped, tag = 'scratch operand']
  %s0 = inlined_call_operand.hbm [shape: bf16[8,3072], index: 0, kind: input, shape index: {}]
  %s1 = inlined_call_operand.hbm [shape: bf16[3072,256], index: 1, kind: input, shape index: {}]
  %s2 = inlined_call_operand.hbm [shape: f32[8,256], index: 2, kind: output, shape index: {}]
  %s3 = sld [smem:[#allocation0]]
  $region61: #{tpu_custom_call.1} parent=0
    _
  %s5 = ssub.s32 1, %s3
  %s6 = scalar_select 0, %s5, %s3
  $region1: #{tpu_custom_call.1} parent=0
    #allocation3 [shape = 'u8[16384]{0}', space=vmem, size = 0x4000, scoped, tag = 'input window, operand 0']
    #allocation4 [shape = 's32[2]{0}', space=sflag, size = 0x8, scoped, tag = 'scoped memory for tpu_custom_call.1']
    #allocation5 [shape = 's32[2]{0}', space=sflag, size = 0x8, scoped, tag = 'scoped memory for tpu_custom_call.1']
    #allocation6 [shape = 'u8[524288]{0}', space=vmem, size = 0x80000, scoped, tag = 'input window, operand 1']
    #allocation7 [shape = 's32[2]{0}', space=sflag, size = 0x8, scoped, tag = 'scoped memory for tpu_custom_call.1']
    #allocation8 [shape = 'u8[8192]{0}', space=vmem, size = 0x2000, scoped, tag = 'output window, operand 0, single buffered']
    %7 = vsyncpa [#allocation4], 0
    %s8 = scalar_lea.sflag [#allocation4], 1
    %9 = vsyncpa %s8, 0
    %10 = vsyncpa [#allocation7], 0
    %s11 = scalar_lea.sflag [#allocation7], 1
    %12 = vsyncpa %s11, 0
    %13 = vsyncpa [#allocation5], 0
    loop: start=0, step=1, limit=8
    $region2: #{tpu_custom_call.1} parent=1 // loop_pre_header
      _
    $region3: #{tpu_custom_call.1} parent=1 // loop_header
      %s15 = sphi 0, %s19
      %p16 = scmp.ge.s32.totalorder %s15, 8
      %s22 = sphi 0, %s41
      %s23 = sphi 0, %s37
      %s24 = sphi 0, %s33
      %s25 = sphi 0, %s22
      %s26 = sphi 0, %s23
      %s27 = sphi 0, %s24
      %s28 = sphi 0, %s25
      %s29 = sphi 0, %s26
      %s30 = sphi 0, %s27
      %s46 = sphi 0, %s48
      %s49 = sphi 0, %s46
      %s50 = sphi 0, %s49
      %s66 = sphi 0, %s50
      %s74 = sphi 0, %s76
      %s77 = sphi 0, %s74
      %s78 = sphi 0, %s77
      %s94 = sphi 0, %s78
      %s100 = sphi 0, %s102
      %s103 = sphi 0, %s100
      %s104 = sphi 0, %s103
      %s120 = sphi 0, %s104
    $region4: #{tpu_custom_call.1} parent=1 // loop_header_branch
      %18 = sbr.rel (%p16) target = $region8
    $region5: #{tpu_custom_call.1} parent=1 // loop_body
      %s20 = ssub.s32 %s15, 1
      %s21 = ssub.s32 %s15, 2
      %s31 = sadd.s32 1, %s24
      %p32 = scmp.ge.s32.totalorder %s31, 6
      %s33 = scalar_select %p32, 0, %s31
      %s34 = sadd.s32 1, %s23
      %s35 = scalar_select %p32, %s34, %s23
      %p36 = scmp.ge.s32.totalorder %s35, 1
      %s37 = scalar_select %p36, 0, %s35
      %s38 = sadd.s32 1, %s22
      %s39 = scalar_select %p36, %s38, %s22
      %p40 = scmp.ge.s32.totalorder %s39, 1
      %s41 = scalar_select %p40, 0, %s39
      %s42 = ssub.s32 %s23, %s37
      %s43 = ssub.s32 %s24, %s33
      %s44 = sor.u32 %s42, %s43
      %p45 = scmp.eq.s32.totalorder %s44, 0
      %s47 = sadd.s32 %s46, 1
      %s48 = scalar_select %p45, %s46, %s47
      %p51 = pneg %p45
      %p52 = scmp.eq.s32.totalorder %s15, 5
      %p53 = por %p51, %p52
      %p54 = scmp.ne.s32.totalorder %s46, %s49
      %p55 = scmp.eq.s32.totalorder %s15, 0
      %p56 = por %p54, %p55
      %p57 = scmp.ne.s32.totalorder %s46, %s49
      %p58 = scmp.eq.s32.totalorder %s20, 5
      %p59 = por %p57, %p58
      %p60 = scmp.ne.s32.totalorder %s49, %s50
      %p61 = scmp.eq.s32.totalorder %s20, 0
      %p62 = por %p60, %p61
      %p63 = scmp.ne.s32.totalorder %s49, %s50
      %p64 = scmp.eq.s32.totalorder %s21, 5
      %p65 = por %p63, %p64
      %p67 = scmp.ne.s32.totalorder %s50, %s66
      %p68 = scmp.eq.s32.totalorder %s21, 0
      %p69 = por %p67, %p68
      %s70 = ssub.s32 %s24, %s33
      %s71 = ssub.s32 %s22, %s41
      %s72 = sor.u32 %s70, %s71
      %p73 = scmp.eq.s32.totalorder %s72, 0
      %s75 = sadd.s32 %s74, 1
      %s76 = scalar_select %p73, %s74, %s75
      %p79 = pneg %p73
      %p80 = scmp.eq.s32.totalorder %s15, 5
      %p81 = por %p79, %p80
      %p82 = scmp.ne.s32.totalorder %s74, %s77
      %p83 = scmp.eq.s32.totalorder %s15, 0
      %p84 = por %p82, %p83
      %p85 = scmp.ne.s32.totalorder %s74, %s77
      %p86 = scmp.eq.s32.totalorder %s20, 5
      %p87 = por %p85, %p86
      %p88 = scmp.ne.s32.totalorder %s77, %s78
      %p89 = scmp.eq.s32.totalorder %s20, 0
      %p90 = por %p88, %p89
      %p91 = scmp.ne.s32.totalorder %s77, %s78
      %p92 = scmp.eq.s32.totalorder %s21, 5
      %p93 = por %p91, %p92
      %p95 = scmp.ne.s32.totalorder %s78, %s94
      %p96 = scmp.eq.s32.totalorder %s21, 0
      %p97 = por %p95, %p96
      %s98 = ssub.s32 %s22, %s41
      %p99 = scmp.eq.s32.totalorder %s98, 0
      %s101 = sadd.s32 %s100, 1
      %s102 = scalar_select %p99, %s100, %s101
      %p105 = pneg %p99
      %p106 = scmp.eq.s32.totalorder %s15, 5
      %p107 = por %p105, %p106
      %p108 = scmp.ne.s32.totalorder %s100, %s103
      %p109 = scmp.eq.s32.totalorder %s15, 0
      %p110 = por %p108, %p109
      %p111 = scmp.ne.s32.totalorder %s100, %s103
      %p112 = scmp.eq.s32.totalorder %s20, 5
      %p113 = por %p111, %p112
      %p114 = scmp.ne.s32.totalorder %s103, %s104
      %p115 = scmp.eq.s32.totalorder %s20, 0
      %p116 = por %p114, %p115
      %p117 = scmp.ne.s32.totalorder %s103, %s104
      %p118 = scmp.eq.s32.totalorder %s21, 5
      %p119 = por %p117, %p118
      %p121 = scmp.ne.s32.totalorder %s104, %s120
      %p122 = scmp.eq.s32.totalorder %s21, 0
      %p123 = por %p121, %p122
      %p124 = scmp.le.s32.totalorder 1, %s15
      %p125 = scmp.lt.s32.totalorder %s15, 7
      %p126 = pnand %p124, %p125
      %p127 = pneg %p126
      // Predicated region
      $region9: #{tpu_custom_call.1} parent=5 // pred_check
        _
      $region10: #{tpu_custom_call.1} parent=5 // pred_check_branch
        %129 = sbr.rel (%p126) target = $region12
      $region11: #{tpu_custom_call.1} parent=5 // pred_region
        %s130 = ssub.s32 %s15, 1
      $region12: #{tpu_custom_call.1} parent=5 // pred_fallthru
        _
      %p131 = scmp.lt.s32.totalorder %s15, 6
      // Predicated region
      $region13: #{tpu_custom_call.1} parent=5 // pred_check
        %p132 = pneg %p131
      $region14: #{tpu_custom_call.1} parent=5 // pred_check_branch
        %134 = sbr.rel (%p132) target = $region16
      $region15: #{tpu_custom_call.1} parent=5 // pred_region
        // Predicated region
        $region17: #{tpu_custom_call.1} parent=15 // pred_check
          %p135 = pneg %p56
        $region18: #{tpu_custom_call.1} parent=15 // pred_check_branch
          %137 = sbr.rel (%p135) target = $region20
        $region19: #{tpu_custom_call.1} parent=15 // pred_region
          %s138 = sand.u32 %s46, 1
          %s139 = scalar_lea.sflag [#allocation4], %s138
          %s140 = sand.u32 %s46, 1
          %s141 = smul.addr %s140, 16
          %s142 = scalar_lea.vmem [#allocation3], %s141
          %s143 = smul.u32 4, %s24
          %s145 = ssub.s32 256, 256
          %146 = vsyncadd %s139, %s145
          %s147 = smul.addr %s23, 24
          %s148 = sadd.s32 %s143, %s147
          %s149 = smul.addr %s148, 64
          %s150 = scalar_lea.hbm %s0, %s149
          %s152 = sshll.u32 %s142, 4
          %s153 = int_to_ptr.vmem [resolvable:$true] %s152
          %155 = dma.hbm_to_vmem [thread:$0]  %s150, 256, %s153, %s139
        $region20: #{tpu_custom_call.1} parent=15 // pred_fallthru
          _
        // Predicated region
        $region21: #{tpu_custom_call.1} parent=15 // pred_check
          %p156 = pneg %p84
        $region22: #{tpu_custom_call.1} parent=15 // pred_check_branch
          %158 = sbr.rel (%p156) target = $region24
        $region23: #{tpu_custom_call.1} parent=15 // pred_region
          %s159 = sand.u32 %s74, 1
          %s160 = scalar_lea.sflag [#allocation7], %s159
          %s161 = sand.u32 %s74, 1
          %s162 = smul.addr %s161, 512
          %s163 = scalar_lea.vmem [#allocation6], %s162
          %s164 = smul.u32 64, %s24
          %s165 = smul.u32 2, %s22
          %s167 = ssub.s32 8192, 8192
          %168 = vsyncadd %s160, %s167
          %s169 = smul.addr %s164, 2
          %s170 = sadd.s32 %s165, %s169
          %s171 = smul.addr %s170, 64
          %s172 = scalar_lea.hbm %s1, %s171
          %s173 = sshll.u32 %s163, 4
          %s174 = int_to_ptr.vmem [resolvable:$true] %s173
          %179 = dma.hbm_to_vmem [thread:$0]  %s172, 8192, %s174, %s160, 128, 128, 8
        $region24: #{tpu_custom_call.1} parent=15 // pred_fallthru
          _
      $region16: #{tpu_custom_call.1} parent=5 // pred_fallthru
        _
      %p180 = scmp.le.s32.totalorder 1, %s15
      %p181 = scmp.lt.s32.totalorder %s15, 7
      %p182 = pnand %p180, %p181
      %p183 = pneg %p182
      // Predicated region
      $region25: #{tpu_custom_call.1} parent=5 // pred_check
        _
      $region26: #{tpu_custom_call.1} parent=5 // pred_check_branch
        %185 = sbr.rel (%p182) target = $region28
      $region27: #{tpu_custom_call.1} parent=5 // pred_region
        %s186 = ssub.s32 %s15, 1
        %s187 = sand.u32 %s49, 1
        %s188 = scalar_lea.sflag [#allocation4], %s187
        %s189 = sand.u32 %s49, 1
        %s190 = smul.addr %s189, 16
        %s191 = scalar_lea.vmem [#allocation3], %s190
        // Predicated region
        $region29: #{tpu_custom_call.1} parent=27 // pred_check
          %p192 = pneg %p62
        $region30: #{tpu_custom_call.1} parent=27 // pred_check_branch
          %194 = sbr.rel (%p192) target = $region32
        $region31: #{tpu_custom_call.1} parent=27 // pred_region
          %195 = dma.done %s188, 256
        $region32: #{tpu_custom_call.1} parent=27 // pred_fallthru
          _
        %s196 = sand.u32 %s77, 1
        %s197 = scalar_lea.sflag [#allocation7], %s196
        %s198 = sand.u32 %s77, 1
        %s199 = smul.addr %s198, 512
        %s200 = scalar_lea.vmem [#allocation6], %s199
        // Predicated region
        $region33: #{tpu_custom_call.1} parent=27 // pred_check
          %p201 = pneg %p90
        $region34: #{tpu_custom_call.1} parent=27 // pred_check_branch
          %203 = sbr.rel (%p201) target = $region36
        $region35: #{tpu_custom_call.1} parent=27 // pred_region
          %204 = dma.done %s197, 8192
        $region36: #{tpu_custom_call.1} parent=27 // pred_fallthru
          _
        %s205 = sand.u32 %s49, 1
        %s206 = scalar_lea.sflag [#allocation4], %s205
        %s207 = sand.u32 %s49, 1
        %s208 = smul.addr %s207, 16
        %s209 = scalar_lea.vmem [#allocation3], %s208
        %p210 = pneg %p62
        %p211 = pneg %p59
        %s212 = sand.u32 %s77, 1
        %s213 = scalar_lea.sflag [#allocation7], %s212
        %s214 = sand.u32 %s77, 1
        %s215 = smul.addr %s214, 512
        %s216 = scalar_lea.vmem [#allocation6], %s215
        %p217 = pneg %p90
        %p218 = pneg %p87
        %p219 = pneg %p116
        %p220 = pneg %p113
        %s221 = smul.u32 4, %s27
        %s222 = smul.u32 64, %s27
        %s223 = smul.u32 2, %s25
        %s224 = smul.u32 2, %s25
        %p225 = scmp.eq.s32.totalorder %s26, 0
        %p226 = scmp.eq.s32.totalorder %s27, 0
        %p227 = pnand %p225, %p226
        %p228 = pneg %p227
        // Predicated region
        $region37: #{tpu_custom_call.1} parent=27 // pred_check
          _
        $region38: #{tpu_custom_call.1} parent=27 // pred_check_branch
          %230 = sbr.rel (%p227) target = $region40
        $region39: #{tpu_custom_call.1} parent=27 // pred_region
          %231 = vst [vmem:[#allocation8] sm:$0xff] 0.0
          %232 = vst [vmem:[#allocation8 + $0x8] sm:$0xff] 0.0
        $region40: #{tpu_custom_call.1} parent=27 // pred_fallthru
          _
        // Predicated region
        $region41: #{tpu_custom_call.1} parent=27 // pred_check
          %p233 = pneg %p226
        $region42: #{tpu_custom_call.1} parent=27 // pred_check_branch
          %235 = sbr.rel (%p233) target = $region44
        $region43: #{tpu_custom_call.1} parent=27 // pred_region
          %236 = vst [vmem:[#allocation2] sm:$0xff] 0.0
          %237 = vst [vmem:[#allocation2 + $0x8] sm:$0xff] 0.0
        $region44: #{tpu_custom_call.1} parent=27 // pred_fallthru
          _
        %v238 = vld [vmem:[#allocation2] sm:$0xff]
        %v239 = vld [vmem:[#allocation2 + $0x8] sm:$0xff]
        %v240 = vld [vmem:[%s191] sm:$0xff]
        %v241 = vld [vmem:[%s191 + $0x8] sm:$0xff]
        %v242 = vld [vmem:[%s200] sm:$0xff]
        %v243 = vld [vmem:[%s200 + $0x8] sm:$0xff]
        %v244 = vld [vmem:[%s200 + $0x10] sm:$0xff]
        %v245 = vld [vmem:[%s200 + $0x18] sm:$0xff]
        %v246 = vld [vmem:[%s200 + $0x20] sm:$0xff]
        %v247 = vld [vmem:[%s200 + $0x28] sm:$0xff]
        %v248 = vld [vmem:[%s200 + $0x30] sm:$0xff]
        %v249 = vld [vmem:[%s200 + $0x38] sm:$0xff]
        %v250 = vld [vmem:[%s200 + $0x40] sm:$0xff]
        %v251 = vld [vmem:[%s200 + $0x48] sm:$0xff]
        %v252 = vld [vmem:[%s200 + $0x50] sm:$0xff]
        %v253 = vld [vmem:[%s200 + $0x58] sm:$0xff]
        %v254 = vld [vmem:[%s200 + $0x60] sm:$0xff]
        %v255 = vld [vmem:[%s200 + $0x68] sm:$0xff]
        %v256 = vld [vmem:[%s200 + $0x70] sm:$0xff]
        %v257 = vld [vmem:[%s200 + $0x78] sm:$0xff]
        %v258 = vld [vmem:[%s200 + $0x80] sm:$0xff]
        %v259 = vld [vmem:[%s200 + $0x88] sm:$0xff]
        %v260 = vld [vmem:[%s200 + $0x90] sm:$0xff]
        %v261 = vld [vmem:[%s200 + $0x98] sm:$0xff]
        %v262 = vld [vmem:[%s200 + $0xa0] sm:$0xff]
        %v263 = vld [vmem:[%s200 + $0xa8] sm:$0xff]
        %v264 = vld [vmem:[%s200 + $0xb0] sm:$0xff]
        %v265 = vld [vmem:[%s200 + $0xb8] sm:$0xff]
        %v266 = vld [vmem:[%s200 + $0xc0] sm:$0xff]
        %v267 = vld [vmem:[%s200 + $0xc8] sm:$0xff]
        %v268 = vld [vmem:[%s200 + $0xd0] sm:$0xff]
        %v269 = vld [vmem:[%s200 + $0xd8] sm:$0xff]
        %v270 = vld [vmem:[%s200 + $0xe0] sm:$0xff]
        %v271 = vld [vmem:[%s200 + $0xe8] sm:$0xff]
        %v272 = vld [vmem:[%s200 + $0xf0] sm:$0xff]
        %v273 = vld [vmem:[%s200 + $0xf8] sm:$0xff]
        %v274 = vld [vmem:[%s200 + $0x100] sm:$0xff]
        %v275 = vld [vmem:[%s200 + $0x108] sm:$0xff]
        %v276 = vld [vmem:[%s200 + $0x110] sm:$0xff]
        %v277 = vld [vmem:[%s200 + $0x118] sm:$0xff]
        %v278 = vld [vmem:[%s200 + $0x120] sm:$0xff]
        %v279 = vld [vmem:[%s200 + $0x128] sm:$0xff]
        %v280 = vld [vmem:[%s200 + $0x130] sm:$0xff]
        %v281 = vld [vmem:[%s200 + $0x138] sm:$0xff]
        %v282 = vld [vmem:[%s200 + $0x140] sm:$0xff]
        %v283 = vld [vmem:[%s200 + $0x148] sm:$0xff]
        %v284 = vld [vmem:[%s200 + $0x150] sm:$0xff]
        %v285 = vld [vmem:[%s200 + $0x158] sm:$0xff]
        %v286 = vld [vmem:[%s200 + $0x160] sm:$0xff]
        %v287 = vld [vmem:[%s200 + $0x168] sm:$0xff]
        %v288 = vld [vmem:[%s200 + $0x170] sm:$0xff]
        %v289 = vld [vmem:[%s200 + $0x178] sm:$0xff]
        %v290 = vld [vmem:[%s200 + $0x180] sm:$0xff]
        %v291 = vld [vmem:[%s200 + $0x188] sm:$0xff]
        %v292 = vld [vmem:[%s200 + $0x190] sm:$0xff]
        %v293 = vld [vmem:[%s200 + $0x198] sm:$0xff]
        %v294 = vld [vmem:[%s200 + $0x1a0] sm:$0xff]
        %v295 = vld [vmem:[%s200 + $0x1a8] sm:$0xff]
        %v296 = vld [vmem:[%s200 + $0x1b0] sm:$0xff]
        %v297 = vld [vmem:[%s200 + $0x1b8] sm:$0xff]
        %v298 = vld [vmem:[%s200 + $0x1c0] sm:$0xff]
        %v299 = vld [vmem:[%s200 + $0x1c8] sm:$0xff]
        %v300 = vld [vmem:[%s200 + $0x1d0] sm:$0xff]
        %v301 = vld [vmem:[%s200 + $0x1d8] sm:$0xff]
        %v302 = vld [vmem:[%s200 + $0x1e0] sm:$0xff]
        %v303 = vld [vmem:[%s200 + $0x1e8] sm:$0xff]
        %v304 = vld [vmem:[%s200 + $0x1f0] sm:$0xff]
        %v305 = vld [vmem:[%s200 + $0x1f8] sm:$0xff]
        %v308 = vunpack.c.l.b16 %v240
        %v309 = vunpack.c.h.b16 %v240
        %v310 = vunpack.c.l.b16 %v241
        %v311 = vunpack.c.h.b16 %v241
        %v312 = vpack.c.b16 %v308, %v308
        %v313 = vpack.c.b16 %v309, %v309
        %v314 = vpack.c.b16 %v310, %v310
        %v315 = vpack.c.b16 %v311, %v311
        %v384 = vunpack.c.l.b16 %v242
        %v385 = vunpack.c.h.b16 %v242
        %v386 = vunpack.c.l.b16 %v243
        %v387 = vunpack.c.h.b16 %v243
        %v388 = vunpack.c.l.b16 %v244
        %v389 = vunpack.c.h.b16 %v244
        %v390 = vunpack.c.l.b16 %v245
        %v391 = vunpack.c.h.b16 %v245
        %v392 = vunpack.c.l.b16 %v246
        %v393 = vunpack.c.h.b16 %v246
        %v394 = vunpack.c.l.b16 %v247
        %v395 = vunpack.c.h.b16 %v247
        %v396 = vunpack.c.l.b16 %v248
        %v397 = vunpack.c.h.b16 %v248
        %v398 = vunpack.c.l.b16 %v249
        %v399 = vunpack.c.h.b16 %v249
        %v400 = vunpack.c.l.b16 %v250
        %v401 = vunpack.c.h.b16 %v250
        %v402 = vunpack.c.l.b16 %v251
        %v403 = vunpack.c.h.b16 %v251
        %v404 = vunpack.c.l.b16 %v252
        %v405 = vunpack.c.h.b16 %v252
        %v406 = vunpack.c.l.b16 %v253
        %v407 = vunpack.c.h.b16 %v253
        %v408 = vunpack.c.l.b16 %v254
        %v409 = vunpack.c.h.b16 %v254
        %v410 = vunpack.c.l.b16 %v255
        %v411 = vunpack.c.h.b16 %v255
        %v412 = vunpack.c.l.b16 %v256
        %v413 = vunpack.c.h.b16 %v256
        %v414 = vunpack.c.l.b16 %v257
        %v415 = vunpack.c.h.b16 %v257
        %v416 = vunpack.c.l.b16 %v258
        %v417 = vunpack.c.h.b16 %v258
        %v418 = vunpack.c.l.b16 %v259
        %v419 = vunpack.c.h.b16 %v259
        %v420 = vunpack.c.l.b16 %v260
        %v421 = vunpack.c.h.b16 %v260
        %v422 = vunpack.c.l.b16 %v261
        %v423 = vunpack.c.h.b16 %v261
        %v424 = vunpack.c.l.b16 %v262
        %v425 = vunpack.c.h.b16 %v262
        %v426 = vunpack.c.l.b16 %v263
        %v427 = vunpack.c.h.b16 %v263
        %v428 = vunpack.c.l.b16 %v264
        %v429 = vunpack.c.h.b16 %v264
        %v430 = vunpack.c.l.b16 %v265
        %v431 = vunpack.c.h.b16 %v265
        %v432 = vunpack.c.l.b16 %v266
        %v433 = vunpack.c.h.b16 %v266
        %v434 = vunpack.c.l.b16 %v267
        %v435 = vunpack.c.h.b16 %v267
        %v436 = vunpack.c.l.b16 %v268
        %v437 = vunpack.c.h.b16 %v268
        %v438 = vunpack.c.l.b16 %v269
        %v439 = vunpack.c.h.b16 %v269
        %v440 = vunpack.c.l.b16 %v270
        %v441 = vunpack.c.h.b16 %v270
        %v442 = vunpack.c.l.b16 %v271
        %v443 = vunpack.c.h.b16 %v271
        %v444 = vunpack.c.l.b16 %v272
        %v445 = vunpack.c.h.b16 %v272
        %v446 = vunpack.c.l.b16 %v273
        %v447 = vunpack.c.h.b16 %v273
        %v448 = vunpack.c.l.b16 %v274
        %v449 = vunpack.c.h.b16 %v274
        %v450 = vunpack.c.l.b16 %v275
        %v451 = vunpack.c.h.b16 %v275
        %v452 = vunpack.c.l.b16 %v276
        %v453 = vunpack.c.h.b16 %v276
        %v454 = vunpack.c.l.b16 %v277
        %v455 = vunpack.c.h.b16 %v277
        %v456 = vunpack.c.l.b16 %v278
        %v457 = vunpack.c.h.b16 %v278
        %v458 = vunpack.c.l.b16 %v279
        %v459 = vunpack.c.h.b16 %v279
        %v460 = vunpack.c.l.b16 %v280
        %v461 = vunpack.c.h.b16 %v280
        %v462 = vunpack.c.l.b16 %v281
        %v463 = vunpack.c.h.b16 %v281
        %v464 = vunpack.c.l.b16 %v282
        %v465 = vunpack.c.h.b16 %v282
        %v466 = vunpack.c.l.b16 %v283
        %v467 = vunpack.c.h.b16 %v283
        %v468 = vunpack.c.l.b16 %v284
        %v469 = vunpack.c.h.b16 %v284
        %v470 = vunpack.c.l.b16 %v285
        %v471 = vunpack.c.h.b16 %v285
        %v472 = vunpack.c.l.b16 %v286
        %v473 = vunpack.c.h.b16 %v286
        %v474 = vunpack.c.l.b16 %v287
        %v475 = vunpack.c.h.b16 %v287
        %v476 = vunpack.c.l.b16 %v288
        %v477 = vunpack.c.h.b16 %v288
        %v478 = vunpack.c.l.b16 %v289
        %v479 = vunpack.c.h.b16 %v289
        %v480 = vunpack.c.l.b16 %v290
        %v481 = vunpack.c.h.b16 %v290
        %v482 = vunpack.c.l.b16 %v291
        %v483 = vunpack.c.h.b16 %v291
        %v484 = vunpack.c.l.b16 %v292
        %v485 = vunpack.c.h.b16 %v292
        %v486 = vunpack.c.l.b16 %v293
        %v487 = vunpack.c.h.b16 %v293
        %v488 = vunpack.c.l.b16 %v294
        %v489 = vunpack.c.h.b16 %v294
        %v490 = vunpack.c.l.b16 %v295
        %v491 = vunpack.c.h.b16 %v295
        %v492 = vunpack.c.l.b16 %v296
        %v493 = vunpack.c.h.b16 %v296
        %v494 = vunpack.c.l.b16 %v297
        %v495 = vunpack.c.h.b16 %v297
        %v496 = vunpack.c.l.b16 %v298
        %v497 = vunpack.c.h.b16 %v298
        %v498 = vunpack.c.l.b16 %v299
        %v499 = vunpack.c.h.b16 %v299
        %v500 = vunpack.c.l.b16 %v300
        %v501 = vunpack.c.h.b16 %v300
        %v502 = vunpack.c.l.b16 %v301
        %v503 = vunpack.c.h.b16 %v301
        %v504 = vunpack.c.l.b16 %v302
        %v505 = vunpack.c.h.b16 %v302
        %v506 = vunpack.c.l.b16 %v303
        %v507 = vunpack.c.h.b16 %v303
        %v508 = vunpack.c.l.b16 %v304
        %v509 = vunpack.c.h.b16 %v304
        %v510 = vunpack.c.l.b16 %v305
        %v511 = vunpack.c.h.b16 %v305
        %v512 = vpack.c.b16 %v386, %v384
        %v513 = vpack.c.b16 %v387, %v385
        %v514 = vpack.c.b16 %v390, %v388
        %v515 = vpack.c.b16 %v391, %v389
        %v516 = vpack.c.b16 %v394, %v392
        %v517 = vpack.c.b16 %v395, %v393
        %v518 = vpack.c.b16 %v398, %v396
        %v519 = vpack.c.b16 %v399, %v397
        %v520 = vpack.c.b16 %v402, %v400
        %v521 = vpack.c.b16 %v403, %v401
        %v522 = vpack.c.b16 %v406, %v404
        %v523 = vpack.c.b16 %v407, %v405
        %v524 = vpack.c.b16 %v410, %v408
        %v525 = vpack.c.b16 %v411, %v409
        %v526 = vpack.c.b16 %v414, %v412
        %v527 = vpack.c.b16 %v415, %v413
        %v528 = vpack.c.b16 %v418, %v416
        %v529 = vpack.c.b16 %v419, %v417
        %v530 = vpack.c.b16 %v422, %v420
        %v531 = vpack.c.b16 %v423, %v421
        %v532 = vpack.c.b16 %v426, %v424
        %v533 = vpack.c.b16 %v427, %v425
        %v534 = vpack.c.b16 %v430, %v428
        %v535 = vpack.c.b16 %v431, %v429
        %v536 = vpack.c.b16 %v434, %v432
        %v537 = vpack.c.b16 %v435, %v433
        %v538 = vpack.c.b16 %v438, %v436
        %v539 = vpack.c.b16 %v439, %v437
        %v540 = vpack.c.b16 %v442, %v440
        %v541 = vpack.c.b16 %v443, %v441
        %v542 = vpack.c.b16 %v446, %v444
        %v543 = vpack.c.b16 %v447, %v445
        %v544 = vpack.c.b16 %v450, %v448
        %v545 = vpack.c.b16 %v451, %v449
        %v546 = vpack.c.b16 %v454, %v452
        %v547 = vpack.c.b16 %v455, %v453
        %v548 = vpack.c.b16 %v458, %v456
        %v549 = vpack.c.b16 %v459, %v457
        %v550 = vpack.c.b16 %v462, %v460
        %v551 = vpack.c.b16 %v463, %v461
        %v552 = vpack.c.b16 %v466, %v464
        %v553 = vpack.c.b16 %v467, %v465
        %v554 = vpack.c.b16 %v470, %v468
        %v555 = vpack.c.b16 %v471, %v469
        %v556 = vpack.c.b16 %v474, %v472
        %v557 = vpack.c.b16 %v475, %v473
        %v558 = vpack.c.b16 %v478, %v476
        %v559 = vpack.c.b16 %v479, %v477
        %v560 = vpack.c.b16 %v482, %v480
        %v561 = vpack.c.b16 %v483, %v481
        %v562 = vpack.c.b16 %v486, %v484
        %v563 = vpack.c.b16 %v487, %v485
        %v564 = vpack.c.b16 %v490, %v488
        %v565 = vpack.c.b16 %v491, %v489
        %v566 = vpack.c.b16 %v494, %v492
        %v567 = vpack.c.b16 %v495, %v493
        %v568 = vpack.c.b16 %v498, %v496
        %v569 = vpack.c.b16 %v499, %v497
        %v570 = vpack.c.b16 %v502, %v500
        %v571 = vpack.c.b16 %v503, %v501
        %v572 = vpack.c.b16 %v506, %v504
        %v573 = vpack.c.b16 %v507, %v505
        %v574 = vpack.c.b16 %v510, %v508
        %v575 = vpack.c.b16 %v511, %v509
        %640 = vmatprep.subr.bf16.mxu0 %v527
        %641 = vmatpush1.bf16.msra.mxu0 %v526
        %642 = vmatprep.subr.bf16.mxu0 %v525
        %643 = vmatpush1.bf16.msra.mxu0 %v524
        %644 = vmatprep.subr.bf16.mxu0 %v523
        %645 = vmatpush1.bf16.msra.mxu0 %v522
        %646 = vmatprep.subr.bf16.mxu0 %v521
        %647 = vmatpush1.bf16.msra.mxu0 %v520
        %648 = vmatprep.subr.bf16.mxu0 %v519
        %649 = vmatpush1.bf16.msra.mxu0 %v518
        %650 = vmatprep.subr.bf16.mxu0 %v517
        %651 = vmatpush1.bf16.msra.mxu0 %v516
        %652 = vmatprep.subr.bf16.mxu0 %v515
        %653 = vmatpush1.bf16.msra.mxu0 %v514
        %654 = vmatprep.subr.bf16.mxu0 %v513
        %655 = vmatpush1.bf16.msra.mxu0 %v512
        %656 = vmatprep.subr.bf16.mxu0 %v543
        %657 = vmatpush2.bf16.msra.mxu0 %v542
        %658 = vmatprep.subr.bf16.mxu0 %v541
        %659 = vmatpush2.bf16.msra.mxu0 %v540
        %660 = vmatprep.subr.bf16.mxu0 %v539
        %661 = vmatpush2.bf16.msra.mxu0 %v538
        %662 = vmatprep.subr.bf16.mxu0 %v537
        %663 = vmatpush2.bf16.msra.mxu0 %v536
        %664 = vmatprep.subr.bf16.mxu0 %v535
        %665 = vmatpush2.bf16.msra.mxu0 %v534
        %666 = vmatprep.subr.bf16.mxu0 %v533
        %667 = vmatpush2.bf16.msra.mxu0 %v532
        %668 = vmatprep.subr.bf16.mxu0 %v531
        %669 = vmatpush2.bf16.msra.mxu0 %v530
        %670 = vmatprep.subr.bf16.mxu0 %v529
        %671 = vmatpush2.bf16.msra.mxu0 %v528
        %672 = vmatprep.mubr.bf16.mxu0 %v313
        %673 = vmatmul.mubr.bf16.gmra.mxu0 %v312
        %v674 = vpop.f32.mrf.mxu0
        %v675 = vadd.f32 0.0, %v674
        %v676 = vpop.f32.mrf.mxu0
        %v677 = vadd.f32 0.0, %v676
        %v678 = vpop.f32.mrf.mxu0
        %v679 = vpop.f32.mrf.mxu0
        %680 = vdwg.mxu0
        %681 = vmatprep.subr.bf16.mxu0 %v559
        %682 = vmatpush1.bf16.msra.mxu0 %v558
        %683 = vmatprep.subr.bf16.mxu0 %v557
        %684 = vmatpush1.bf16.msra.mxu0 %v556
        %685 = vmatprep.subr.bf16.mxu0 %v555
        %686 = vmatpush1.bf16.msra.mxu0 %v554
        %687 = vmatprep.subr.bf16.mxu0 %v553
        %688 = vmatpush1.bf16.msra.mxu0 %v552
        %689 = vmatprep.subr.bf16.mxu0 %v551
        %690 = vmatpush1.bf16.msra.mxu0 %v550
        %691 = vmatprep.subr.bf16.mxu0 %v549
        %692 = vmatpush1.bf16.msra.mxu0 %v548
        %693 = vmatprep.subr.bf16.mxu0 %v547
        %694 = vmatpush1.bf16.msra.mxu0 %v546
        %695 = vmatprep.subr.bf16.mxu0 %v545
        %696 = vmatpush1.bf16.msra.mxu0 %v544
        %697 = vmatprep.subr.bf16.mxu0 %v575
        %698 = vmatpush2.bf16.msra.mxu0 %v574
        %699 = vmatprep.subr.bf16.mxu0 %v573
        %700 = vmatpush2.bf16.msra.mxu0 %v572
        %701 = vmatprep.subr.bf16.mxu0 %v571
        %702 = vmatpush2.bf16.msra.mxu0 %v570
        %703 = vmatprep.subr.bf16.mxu0 %v569
        %704 = vmatpush2.bf16.msra.mxu0 %v568
        %705 = vmatprep.subr.bf16.mxu0 %v567
        %706 = vmatpush2.bf16.msra.mxu0 %v566
        %707 = vmatprep.subr.bf16.mxu0 %v565
        %708 = vmatpush2.bf16.msra.mxu0 %v564
        %709 = vmatprep.subr.bf16.mxu0 %v563
        %710 = vmatpush2.bf16.msra.mxu0 %v562
        %711 = vmatprep.subr.bf16.mxu0 %v561
        %712 = vmatpush2.bf16.msra.mxu0 %v560
        %713 = vmatprep.mubr.bf16.mxu0 %v315
        %714 = vmatmul.mubr.bf16.gmra.mxu0 %v314
        %v715 = vpop.f32.mrf.mxu0
        %v716 = vadd.f32 %v675, %v715
        %v717 = vpop.f32.mrf.mxu0
        %v718 = vadd.f32 %v677, %v717
        %v719 = vpop.f32.mrf.mxu0
        %v720 = vpop.f32.mrf.mxu0
        %721 = vdwg.mxu0
        %v722 = vadd.f32 %v238, %v716
        %v723 = vadd.f32 %v239, %v718
        %724 = vst [vmem:[#allocation2] sm:$0xff] %v722
        %725 = vst [vmem:[#allocation2 + $0x8] sm:$0xff] %v723
        %p726 = scmp.eq.s32.totalorder %s27, 5
        // Predicated region
        $region45: #{tpu_custom_call.1} parent=27 // pred_check
          %p727 = pneg %p726
        $region46: #{tpu_custom_call.1} parent=27 // pred_check_branch
          %729 = sbr.rel (%p727) target = $region48
        $region47: #{tpu_custom_call.1} parent=27 // pred_region
          %v730 = vld [vmem:[#allocation2] sm:$0xff]
          %v731 = vld [vmem:[#allocation2 + $0x8] sm:$0xff]
          %v732 = vmax.f32 %v730, 0.0
          %v733 = vmax.f32 %v731, 0.0
          %s734 = smul.u32 %s26, 8
          %v735 = vlaneseq
          %v736 = vand.u32 %v735, 127
          %v737 = vstv %s734
          %v738 = vadd.s32 %v737, %v736
          %v739 = vlaneseq
          %v740 = vshrl.u32 %v739, 7
          %v741 = vmul.u32 %v740, 4
          %vm742 = vcmp.ge.s32.totalorder %v738, %v741
          %v743 = vadd.s32 %v741, 4
          %vm744 = vcmp.lt.s32.totalorder %v738, %v743
          %vm745 = vmand %vm742, %vm744
          %v746 = vsel %vm745, 0.25, 0.0
          %v747 = vld [vmem:[#allocation8] sm:$0xff]
          %v748 = vld [vmem:[#allocation8 + $0x8] sm:$0xff]
          %vm749 = vcmask 64512
          %v751 = vsel %vm749, %v746, 0
          %753 = vmatprep.subr.mxu0 0.0
          %754 = vmatpush1.msra.mxu0 0.0
          %755 = vmatprep.subr.mxu0 0.0
          %756 = vmatpush1.msra.mxu0 0.0
          %757 = vmatprep.subr.mxu0 0.0
          %758 = vmatpush1.msra.mxu0 0.0
          %759 = vmatprep.subr.mxu0 0.0
          %760 = vmatpush1.msra.mxu0 0.0
          %761 = vmatprep.subr.mxu0 0.0
          %762 = vmatpush1.msra.mxu0 0.0
          %763 = vmatprep.subr.mxu0 0.0
          %764 = vmatpush1.msra.mxu0 0.0
          %765 = vmatprep.subr.mxu0 0.0
          %766 = vmatpush1.msra.mxu0 0.0
          %767 = vmatprep.subr.mxu0 0.0
          %768 = vmatpush1.msra.mxu0 0.0
          %769 = vmatprep.subr.mxu0 0.0
          %770 = vmatpush1.msra.mxu0 0.0
          %771 = vmatprep.subr.mxu0 0.0
          %772 = vmatpush1.msra.mxu0 0.0
          %773 = vmatprep.subr.mxu0 0.0
          %774 = vmatpush1.msra.mxu0 0.0
          %775 = vmatprep.subr.mxu0 0.0
          %776 = vmatpush1.msra.mxu0 0.0
          %777 = vmatprep.subr.mxu0 0.0
          %778 = vmatpush1.msra.mxu0 0.0
          %779 = vmatprep.subr.mxu0 0.0
          %780 = vmatpush1.msra.mxu0 0.0
          %781 = vmatprep.subr.mxu0 0.0
          %782 = vmatpush1.msra.mxu0 0.0
          %783 = vmatprep.subr.mxu0 %v733
          %784 = vmatpush1.msra.mxu0 %v732
          %785 = vmatprep.subr.mxu0 0.0
          %786 = vmatpush2.msra.mxu0 0.0
          %787 = vmatprep.subr.mxu0 0.0
          %788 = vmatpush2.msra.mxu0 0.0
          %789 = vmatprep.subr.mxu0 0.0
          %790 = vmatpush2.msra.mxu0 0.0
          %791 = vmatprep.subr.mxu0 0.0
          %792 = vmatpush2.msra.mxu0 0.0
          %793 = vmatprep.subr.mxu0 0.0
          %794 = vmatpush2.msra.mxu0 0.0
          %795 = vmatprep.subr.mxu0 0.0
          %796 = vmatpush2.msra.mxu0 0.0
          %797 = vmatprep.subr.mxu0 0.0
          %798 = vmatpush2.msra.mxu0 0.0
          %799 = vmatprep.subr.mxu0 0.0
          %800 = vmatpush2.msra.mxu0 0.0
          %801 = vmatprep.subr.mxu0 0.0
          %802 = vmatpush2.msra.mxu0 0.0
          %803 = vmatprep.subr.mxu0 0.0
          %804 = vmatpush2.msra.mxu0 0.0
          %805 = vmatprep.subr.mxu0 0.0
          %806 = vmatpush2.msra.mxu0 0.0
          %807 = vmatprep.subr.mxu0 0.0
          %808 = vmatpush2.msra.mxu0 0.0
          %809 = vmatprep.subr.mxu0 0.0
          %810 = vmatpush2.msra.mxu0 0.0
          %811 = vmatprep.subr.mxu0 0.0
          %812 = vmatpush2.msra.mxu0 0.0
          %813 = vmatprep.subr.mxu0 0.0
          %814 = vmatpush2.msra.mxu0 0.0
          %815 = vmatprep.subr.mxu0 0.0
          %816 = vmatpush2.msra.mxu0 0.0
          %817 = vmatprep.mubr.f32.mxu0 0.0
          %818 = vmatmul.mubr.f32.gmra.mxu0 %v751
          %v819 = vpop.f32.mrf.mxu0
          %v820 = vadd.f32 0.0, %v819
          %v821 = vpop.f32.mrf.mxu0
          %v822 = vadd.f32 0.0, %v821
          %823 = vdwg.mxu0
          %v824 = vadd.f32 %v747, %v820
          %v825 = vadd.f32 %v748, %v822
          %826 = vst [vmem:[#allocation8] sm:$0xff] %v824
          %827 = vst [vmem:[#allocation8 + $0x8] sm:$0xff] %v825
        $region48: #{tpu_custom_call.1} parent=27 // pred_fallthru
          _
        // Predicated region
        $region49: #{tpu_custom_call.1} parent=27 // pred_check
          %p828 = pneg %p113
        $region50: #{tpu_custom_call.1} parent=27 // pred_check_branch
          %830 = sbr.rel (%p828) target = $region52
        $region51: #{tpu_custom_call.1} parent=27 // pred_region
          %s831 = smul.u32 2, %s25
          %s833 = ssub.s32 256, 256
          %834 = vsyncadd [#allocation5], %s833
          %s835 = smul.addr %s831, 128
          %s836 = scalar_lea.hbm %s2, %s835
          %s838 = sshll.u32 [#allocation8], 4
          %s839 = int_to_ptr.vmem [resolvable:$true] %s838
          %841 = dma.vmem_to_hbm [thread:$0]  %s839, 256, %s836, [#allocation5]
        $region52: #{tpu_custom_call.1} parent=27 // pred_fallthru
          _
        // Predicated region
        $region53: #{tpu_custom_call.1} parent=27 // pred_check
          %p842 = pneg %p113
        $region54: #{tpu_custom_call.1} parent=27 // pred_check_branch
          %844 = sbr.rel (%p842) target = $region56
        $region55: #{tpu_custom_call.1} parent=27 // pred_region
          %845 = dma.done [#allocation5], 256
        $region56: #{tpu_custom_call.1} parent=27 // pred_fallthru
          _
      $region28: #{tpu_custom_call.1} parent=5 // pred_fallthru
        _
      %p846 = scmp.le.s32.totalorder 2, %s15
      // Predicated region
      $region57: #{tpu_custom_call.1} parent=5 // pred_check
        %p847 = pneg %p846
      $region58: #{tpu_custom_call.1} parent=5 // pred_check_branch
        %849 = sbr.rel (%p847) target = $region60
      $region59: #{tpu_custom_call.1} parent=5 // pred_region
        %s850 = ssub.s32 %s15, 2
      $region60: #{tpu_custom_call.1} parent=5 // pred_fallthru
        _
    $region6: #{tpu_custom_call.1} parent=1 // loop_footer
      %s19 = sadd.s32 1, %s15
    $region7: #{tpu_custom_call.1} parent=1 // loop_footer_branch
      %14 = sbr.rel target = $region3
    $region8: #{tpu_custom_call.1} parent=1 // loop_exit
      _
    %851 = vsyncpa [#allocation4], 1
    %s852 = scalar_lea.sflag [#allocation4], 1
    %853 = vsyncpa %s852, 1
    %854 = vsyncpa [#allocation7], 1
    %s855 = scalar_lea.sflag [#allocation7], 1
    %856 = vsyncpa %s855, 1
    %857 = vsyncpa [#allocation5], 1
    %s858 = scalar_lea.sflag [#allocation5], 1
    %859 = vsyncpa %s858, 1

</llo_original>
